<compile_context>
chip_gen: v6e
topology: v6e:2x2x1
jax: 0.10.0
libtpu: 0.0.40
codegen_flags: <defaults>
</compile_context>

<pallas_src>
import functools

import jax
import jax.numpy as jnp
from jax.experimental import pallas as pl
from jax.experimental.pallas import tpu as pltpu

_LANE = 128
_SUBLANE = 8


def _round_up(n, m):
    return ((n + m - 1) // m) * m


def _sumpool_kernel(x_ref, o_ref, pad_ref, row_ref, *, k, H, W, woff):
    # x_ref:   (H, W, CB)   unpadded input block (channels in the lane dim)
    # o_ref:   (H, W, CB)   output block
    # pad_ref: (Hp, Wa, CB) f32 halo scratch; interior lives at
    #          [p:p+H, woff:woff+W, :] with woff = 8 (sublane-aligned).
    # row_ref: (Hp, W, CB)  f32 row-sum scratch for the separable pass.
    p = k // 2
    Wa = pad_ref.shape[1]

    # Zero the halo ONCE.  Correctness invariant: pad_ref persists across grid
    # steps, the interior copy below never writes the border strips, and the
    # grid axis is "arbitrary" (serial on one TensorCore), so the zeros written
    # at step 0 remain valid for every later step.  Do NOT switch the grid axis
    # to "parallel" (megacore gives each core its own scratch, and the second
    # core never runs step 0) or widen this write per step.
    @pl.when(pl.program_id(0) == 0)
    def _():
        pad_ref[...] = jnp.zeros_like(pad_ref)

    # Sublane-aligned interior copy: W offset 8 is a multiple of the 8-sublane
    # tile, so this is a plain aligned store.  Single upcast to f32 here
    # instead of one per shifted slice (a no-op for f32 inputs).
    pad_ref[p:p + H, woff:woff + W, :] = x_ref[...].astype(jnp.float32)

    # ---- Separable box sum, O(k) adds per output element. ----
    # Row pass (along W): one aligned full-width load; W-window shifts are XLU
    # rolls (or an aligned slice when the start offset is a sublane multiple)
    # instead of misaligned sublane slices.  The zeroed halo columns
    # [woff-p:woff] and [woff+W:woff+W+p] supply the padding, and
    # Wa >= woff + W + p guarantees the rolled-in wrap never reaches [0:W].
    # (If bundle dumps ever show full-block f32 temporaries spilling for
    #  CB >= 512, accumulate in 8-row strips via a small fori_loop instead.)
    full = pad_ref[...]
    rsum = None
    for dj in range(k):
        s = woff - p + dj                      # window start column in pad_ref
        if s % _SUBLANE == 0:
            term = full[:, s:s + W, :]
        else:
            term = pltpu.roll(full, Wa - s, axis=1)[:, :W, :]
        rsum = term if rsum is None else rsum + term
    row_ref[...] = rsum

    # Column pass (along H): H is the outer (non-sublane) dim, so these slice
    # reads are naturally aligned.
    acc = row_ref[0:H, :, :]
    for di in range(1, k):
        acc = acc + row_ref[di:di + H, :, :]
    # TODO(synk): for k >= 7 switch both passes to O(1) sliding-window running
    # sums (add incoming row/col, subtract outgoing).

    # For low-precision inputs the f32 accumulator is rounded once here (the
    # PyTorch reference also accumulates in f32 and rounds on the output).
    o_ref[...] = acc.astype(o_ref.dtype)


def _vmem_capacity_bytes():
    try:
        info = pltpu.get_tpu_info()
        cap = int(getattr(info, "vmem_capacity_bytes", 0) or 0)
        if cap > 0:
            return cap
    except Exception:
        pass
    return 64 * 1024 * 1024  # conservative: assume v7x-sized per-TC VMEM


def _per_lane_vmem_bytes(H, W, Hp, Wa, in_itemsize):
    # Per-channel VMEM bytes for one grid step: double-buffered in/out blocks,
    # the two f32 scratches, plus headroom for the compiler's live f32
    # temporaries (full / rsum / acc value chains).
    return (4 * H * W * in_itemsize
            + (Hp * Wa + Hp * W) * 4
            + (Hp * Wa + Hp * W + H * W) * 4)


def _pick_channel_block(NCr, per_lane_bytes, budget_bytes, max_cb=None):
    """Largest 128-multiple channel block dividing NCr that fits the budget.

    Single-TensorCore chips (v5e/v6e) want the largest block (the grid is a
    serial loop); feeding v7x's second core should come from a halo-aware
    spatial grid axis (TODO below), not from shrinking CB.
    """
    best = _LANE
    cb = _LANE
    while cb <= NCr:
        if (NCr % cb == 0 and cb * per_lane_bytes <= budget_bytes
                and (max_cb is None or cb <= max_cb)):
            best = cb
        cb += _LANE
    # TODO(synk): if even CB=128 exceeds the budget (very large H*W planes),
    # add halo-aware spatial (H) tiling instead of relying on the raised vmem
    # limit below.
    return best


def sum_pool_2d_channels_last(xc, kernel_size, *, max_channel_block=None):
    """k x k zero-padded box-sum on a channels-last (H, W, NC) array.

    NC must be a multiple of 128 (lane-dense).  Preferred entry point when the
    surrounding model keeps activations channels-last: it skips the
    NCHW <-> HWC transposes (each an extra HBM read+write) around this
    memory-bound kernel.
    """
    assert isinstance(kernel_size, int) and kernel_size % 2 == 1
    H, W, NCr = xc.shape
    assert NCr % _LANE == 0
    k = kernel_size
    p = k // 2
    Hp = H + 2 * p
    woff = _SUBLANE                              # sublane-aligned interior offset
    Wa = _round_up(woff + W + p, _SUBLANE)       # halo scratch width
    itemsize = jnp.dtype(xc.dtype).itemsize

    cap = _vmem_capacity_bytes()
    if cap >= 96 * 1024 * 1024:                  # 128 MiB-VMEM parts (v5e/v6e)
        budget, vlimit = 56 * 1024 * 1024, 96 * 1024 * 1024
    else:                                        # v7x: 64 MiB per TensorCore
        budget, vlimit = 24 * 1024 * 1024, 32 * 1024 * 1024

    per_lane = _per_lane_vmem_bytes(H, W, Hp, Wa, itemsize)
    CB = _pick_channel_block(NCr, per_lane, budget, max_channel_block)
    # Never let the scoped-VMEM default reject the chosen block.
    vlimit = max(vlimit, min(cap, int(1.25 * CB * per_lane)))

    cost = pl.CostEstimate(
        flops=2 * k * H * W * NCr,               # separable: k adds per axis
        transcendentals=0,
        bytes_accessed=2 * H * W * NCr * itemsize,
    )

    return pl.pallas_call(
        functools.partial(_sumpool_kernel, k=k, H=H, W=W, woff=woff),
        out_shape=jax.ShapeDtypeStruct((H, W, NCr), xc.dtype),
        grid=(NCr // CB,),
        in_specs=[pl.BlockSpec((H, W, CB), lambda c: (0, 0, c))],
        out_specs=pl.BlockSpec((H, W, CB), lambda c: (0, 0, c)),
        scratch_shapes=[
            pltpu.VMEM((Hp, Wa, CB), jnp.float32),   # halo (border zeroed once)
            pltpu.VMEM((Hp, W, CB), jnp.float32),    # row-sum scratch
        ],
        compiler_params=pltpu.CompilerParams(
            # "arbitrary": the grid must run serially on one core so the
            # zero-once halo border stays valid.  TODO(synk): feed v7x's second
            # TensorCore with a halo-aware spatial (H) grid axis marked
            # "parallel" instead of splitting channels.
            dimension_semantics=("arbitrary",),
            vmem_limit_bytes=vlimit,
        ),
        cost_estimate=cost,
    )(xc)


def sum_pool_2d(x, kernel_size, *, max_channel_block=None):
    """Pallas equivalent of SumPool2d(kernel_size)(x) for NCHW input x."""
    # TODO(synk): even / tuple kernel_size changes the output spatial size in
    # PyTorch (and tuple // 2 is invalid there anyway); only odd ints supported.
    assert isinstance(kernel_size, int) and kernel_size % 2 == 1
    N, C, H, W = x.shape
    NC = N * C
    NCr = _round_up(NC, _LANE)

    # Layout plumbing: these transposes add ~2 HBM passes on each side of a
    # 2-HBM-pass kernel.  Prefer sum_pool_2d_channels_last when the surrounding
    # model already keeps activations channels-last.
    xt = jnp.transpose(x.reshape(NC, H, W), (1, 2, 0))
    if NCr != NC:
        xt = jnp.pad(xt, ((0, 0), (0, 0), (0, NCr - NC)))

    out = sum_pool_2d_channels_last(xt, kernel_size,
                                    max_channel_block=max_channel_block)
    return jnp.transpose(out[:, :, :NC], (2, 0, 1)).reshape(N, C, H, W)


def _reference_sum_pool(x, k):
    """Pure-JAX reference: AvgPool2d(k, stride=1, pad=k//2) * k*k."""
    p = k // 2
    N, C, H, W = x.shape
    xp = jnp.pad(x, ((0, 0), (0, 0), (p, p), (p, p)))
    acc = jnp.zeros_like(x)
    for di in range(k):
        for dj in range(k):
            acc = acc + xp[:, :, di:di + H, dj:dj + W]
    return acc


if __name__ == "__main__":
    k1, k2 = jax.random.split(jax.random.PRNGKey(0))

    # Small NCHW input consistent with the module's forward (density "dotmap").
    x = jax.random.normal(k1, (2, 4, 16, 16), dtype=jnp.float32)

    # Exercise both roll-shift parities (k=3 and k=5) on a single-step grid.
    for kernel_size in (3, 5):
        out = jax.block_until_ready(sum_pool_2d(x, kernel_size))
        ref = _reference_sum_pool(x, kernel_size)
        assert out.shape == x.shape and out.dtype == x.dtype
        assert jnp.allclose(out, ref, atol=1e-4, rtol=1e-4), kernel_size

    # Multi-step grid: checks that the zero-once halo border stays valid across
    # grid steps (persistent scratch + "arbitrary" semantics).
    x2 = jax.random.normal(k2, (2, 128, 8, 8), dtype=jnp.float32)
    out2 = jax.block_until_ready(sum_pool_2d(x2, 3, max_channel_block=128))
    ref2 = _reference_sum_pool(x2, 3)
    assert jnp.allclose(out2, ref2, atol=1e-4, rtol=1e-4)

    print("KERNEL_OK")
</pallas_src>

<mosaic_0001>
module attributes {stable_mosaic.version = 11 : i64} {
  func.func @_sumpool_kernel(%arg0: i32, %arg1: memref<16x16x128xf32, #tpu.memory_space<vmem>>, %arg2: memref<16x16x128xf32, #tpu.memory_space<vmem>>, %arg3: memref<18x32x128xf32, #tpu.memory_space<vmem>>, %arg4: memref<18x16x128xf32, #tpu.memory_space<vmem>>) attributes {dimension_semantics = [#tpu.dimension_semantics<arbitrary>], iteration_bounds = array<i64: 1>, scalar_prefetch = 0 : i64, scratch_operands = 2 : i64, tpu.core_type = #tpu.core_type<tc>, window_params = [{transform_indices = @transform_0, window_bounds = array<i64: 16, 16, 128>}, {transform_indices = @transform_1, window_bounds = array<i64: 16, 16, 128>}]} {
    %c0_i32 = arith.constant 0 : i32
    %0 = arith.cmpi eq, %arg0, %c0_i32 : i32
    %1 = arith.extui %0 : i1 to i32
    %c0_i32_0 = arith.constant 0 : i32
    %2 = arith.cmpi ne, %1, %c0_i32_0 : i32
    scf.if %2 {
      %cst = arith.constant 0.000000e+00 : f32
      %20 = vector.broadcast %cst : f32 to vector<18x32x128xf32>
      %c0_21 = arith.constant 0 : index
      %c0_22 = arith.constant 0 : index
      %c0_23 = arith.constant 0 : index
      %21 = vector.load %arg3[%c0_21, %c0_22, %c0_23] : memref<18x32x128xf32, #tpu.memory_space<vmem>>, vector<18x32x128xf32>
      tpu.vector_store %arg3[%c0_21, %c0_22, %c0_23], %20 {strides = array<i32>} : memref<18x32x128xf32, #tpu.memory_space<vmem>>, vector<18x32x128xf32>,
    } else {
    }
    %c0 = arith.constant 0 : index
    %c0_1 = arith.constant 0 : index
    %c0_2 = arith.constant 0 : index
    %3 = vector.load %arg1[%c0, %c0_1, %c0_2] : memref<16x16x128xf32, #tpu.memory_space<vmem>>, vector<16x16x128xf32>
    %c1 = arith.constant 1 : index
    %c8 = arith.constant 8 : index
    %c0_3 = arith.constant 0 : index
    %4 = vector.load %arg3[%c1, %c8, %c0_3] : memref<18x32x128xf32, #tpu.memory_space<vmem>>, vector<16x16x128xf32>
    tpu.vector_store %arg3[%c1, %c8, %c0_3], %3 {strides = array<i32>} : memref<18x32x128xf32, #tpu.memory_space<vmem>>, vector<16x16x128xf32>,
    %c0_4 = arith.constant 0 : index
    %c0_5 = arith.constant 0 : index
    %c0_6 = arith.constant 0 : index
    %5 = vector.load %arg3[%c0_4, %c0_5, %c0_6] : memref<18x32x128xf32, #tpu.memory_space<vmem>>, vector<18x32x128xf32>
    %c25_i32 = arith.constant 25 : i32
    %6 = tpu.dynamic_rotate %5 by %c25_i32 dim 1 : vector<18x32x128xf32>, i32 -> vector<18x32x128xf32>
    %7 = vector.extract_strided_slice %6 {offsets = [0, 0, 0], sizes = [18, 16, 128], strides = [1, 1, 1]} : vector<18x32x128xf32> to vector<18x16x128xf32>
    %8 = vector.extract_strided_slice %5 {offsets = [0, 8, 0], sizes = [18, 16, 128], strides = [1, 1, 1]} : vector<18x32x128xf32> to vector<18x16x128xf32>
    %9 = arith.addf %7, %8 : vector<18x16x128xf32>
    %c23_i32 = arith.constant 23 : i32
    %10 = tpu.dynamic_rotate %5 by %c23_i32 dim 1 : vector<18x32x128xf32>, i32 -> vector<18x32x128xf32>
    %11 = vector.extract_strided_slice %10 {offsets = [0, 0, 0], sizes = [18, 16, 128], strides = [1, 1, 1]} : vector<18x32x128xf32> to vector<18x16x128xf32>
    %12 = arith.addf %9, %11 : vector<18x16x128xf32>
    %c0_7 = arith.constant 0 : index
    %c0_8 = arith.constant 0 : index
    %c0_9 = arith.constant 0 : index
    %13 = vector.load %arg4[%c0_7, %c0_8, %c0_9] : memref<18x16x128xf32, #tpu.memory_space<vmem>>, vector<18x16x128xf32>
    tpu.vector_store %arg4[%c0_7, %c0_8, %c0_9], %12 {strides = array<i32>} : memref<18x16x128xf32, #tpu.memory_space<vmem>>, vector<18x16x128xf32>,
    %c0_10 = arith.constant 0 : index
    %c0_11 = arith.constant 0 : index
    %c0_12 = arith.constant 0 : index
    %14 = vector.load %arg4[%c0_10, %c0_11, %c0_12] : memref<18x16x128xf32, #tpu.memory_space<vmem>>, vector<16x16x128xf32>
    %c1_13 = arith.constant 1 : index
    %c0_14 = arith.constant 0 : index
    %c0_15 = arith.constant 0 : index
    %15 = vector.load %arg4[%c1_13, %c0_14, %c0_15] : memref<18x16x128xf32, #tpu.memory_space<vmem>>, vector<16x16x128xf32>
    %16 = arith.addf %14, %15 : vector<16x16x128xf32>
    %c2 = arith.constant 2 : index
    %c0_16 = arith.constant 0 : index
    %c0_17 = arith.constant 0 : index
    %17 = vector.load %arg4[%c2, %c0_16, %c0_17] : memref<18x16x128xf32, #tpu.memory_space<vmem>>, vector<16x16x128xf32>
    %18 = arith.addf %16, %17 : vector<16x16x128xf32>
    %c0_18 = arith.constant 0 : index
    %c0_19 = arith.constant 0 : index
    %c0_20 = arith.constant 0 : index
    %19 = vector.load %arg2[%c0_18, %c0_19, %c0_20] : memref<16x16x128xf32, #tpu.memory_space<vmem>>, vector<16x16x128xf32>
    tpu.vector_store %arg2[%c0_18, %c0_19, %c0_20], %18 {strides = array<i32>} : memref<16x16x128xf32, #tpu.memory_space<vmem>>, vector<16x16x128xf32>,
    return
  }
  func.func @transform_0(%arg0: i32) -> (i32, i32, i32) {
    %c0_i32 = arith.constant 0 : i32
    %c0_i32_0 = arith.constant 0 : i32
    %c0_i32_1 = arith.constant 0 : i32
    return %c0_i32, %c0_i32_0, %arg0 : i32, i32, i32
  }
  func.func @transform_1(%arg0: i32) -> (i32, i32, i32) {
    %c0_i32 = arith.constant 0 : i32
    %c0_i32_0 = arith.constant 0 : i32
    %c0_i32_1 = arith.constant 0 : i32
    return %c0_i32, %c0_i32_0, %arg0 : i32, i32, i32
  }
}

</mosaic_0001>

<llo_original>
// kernel: tpu_custom_call.1
$region0: #{tpu_custom_call.1}
  #allocation0 [shape = 'u32[]', space=smem, size = 0x4, offset = 0x4, fixed_abs, tag = 'smem constant byte address 0x4 - core index']
  #allocation1 [shape = 'u32[144,128]{1,0:T(1,128)}', space=vmem, size = 0x12000, scoped, tag = 'internal scratch']
  #allocation2 [shape = 'f32[18,32,128]{2,1,0:T(8,128)}', space=vmem, size = 0x48000, scoped, tag = 'scratch operand']
  #allocation3 [shape = 'f32[18,16,128]{2,1,0:T(8,128)}', space=vmem, size = 0x24000, scoped, tag = 'scratch operand']
  %s0 = inlined_call_operand.hbm [shape: f32[16,16,128], index: 0, kind: input, shape index: {}]
  %s1 = inlined_call_operand.hbm [shape: f32[16,16,128], index: 1, kind: output, shape index: {}]
  %s2 = sld [smem:[#allocation0]]
  $region22: #{tpu_custom_call.1} parent=0
    _
  %s4 = ssub.s32 1, %s2
  %s5 = scalar_select 0, %s4, %s2
  $region1: #{tpu_custom_call.1} parent=0
    #allocation4 [shape = 'u8[131072]{0}', space=vmem, size = 0x20000, scoped, tag = 'input window, operand 0, single buffered']
    #allocation5 [shape = 's32[1]{0}', space=sflag, size = 0x4, scoped, tag = 'scoped memory for tpu_custom_call.1']
    #allocation6 [shape = 's32[1]{0}', space=sflag, size = 0x4, scoped, tag = 'scoped memory for tpu_custom_call.1']
    #allocation7 [shape = 'u8[131072]{0}', space=vmem, size = 0x20000, scoped, tag = 'output window, operand 0, single buffered']
    %6 = vsyncpa [#allocation5], 0
    %7 = vsyncpa [#allocation6], 0
    // Predicated region
    $region2: #{tpu_custom_call.1} parent=1 // pred_check
      _
    $region3: #{tpu_custom_call.1} parent=1 // pred_check_branch
      %9 = sbr.rel (0) target = $region5
    $region4: #{tpu_custom_call.1} parent=1 // pred_region
      %s11 = ssub.s32 4096, 4096
      %12 = vsyncadd [#allocation5], %s11
      %s13 = sshll.u32 [#allocation4], 4
      %s14 = int_to_ptr.vmem [resolvable:$true] %s13
      %19 = dma.hbm_to_vmem [thread:$0]  %s0, 4096, %s14, [#allocation5], 128, 128, 8
    $region5: #{tpu_custom_call.1} parent=1 // pred_fallthru
      _
    // Predicated region
    $region6: #{tpu_custom_call.1} parent=1 // pred_check
      _
    $region7: #{tpu_custom_call.1} parent=1 // pred_check_branch
      %21 = sbr.rel (0) target = $region9
    $region8: #{tpu_custom_call.1} parent=1 // pred_region
      %22 = dma.done [#allocation5], 4096
    $region9: #{tpu_custom_call.1} parent=1 // pred_fallthru
      _
    %p23 = scmp.eq.s32.totalorder 0, 0
    // Predicated region
    $region10: #{tpu_custom_call.1} parent=1 // pred_check
      %p24 = pneg %p23
    $region11: #{tpu_custom_call.1} parent=1 // pred_check_branch
      %26 = sbr.rel (%p24) target = $region13
    $region12: #{tpu_custom_call.1} parent=1 // pred_region
      %27 = vst [vmem:[#allocation2] sm:$0xff] 0.0
      %28 = vst [vmem:[#allocation2 + $0x8] sm:$0xff] 0.0
      %29 = vst [vmem:[#allocation2 + $0x10] sm:$0xff] 0.0
      %30 = vst [vmem:[#allocation2 + $0x18] sm:$0xff] 0.0
      %31 = vst [vmem:[#allocation2 + $0x20] sm:$0xff] 0.0
      %32 = vst [vmem:[#allocation2 + $0x28] sm:$0xff] 0.0
      %33 = vst [vmem:[#allocation2 + $0x30] sm:$0xff] 0.0
      %34 = vst [vmem:[#allocation2 + $0x38] sm:$0xff] 0.0
      %35 = vst [vmem:[#allocation2 + $0x40] sm:$0xff] 0.0
      %36 = vst [vmem:[#allocation2 + $0x48] sm:$0xff] 0.0
      %37 = vst [vmem:[#allocation2 + $0x50] sm:$0xff] 0.0
      %38 = vst [vmem:[#allocation2 + $0x58] sm:$0xff] 0.0
      %39 = vst [vmem:[#allocation2 + $0x60] sm:$0xff] 0.0
      %40 = vst [vmem:[#allocation2 + $0x68] sm:$0xff] 0.0
      %41 = vst [vmem:[#allocation2 + $0x70] sm:$0xff] 0.0
      %42 = vst [vmem:[#allocation2 + $0x78] sm:$0xff] 0.0
      %43 = vst [vmem:[#allocation2 + $0x80] sm:$0xff] 0.0
      %44 = vst [vmem:[#allocation2 + $0x88] sm:$0xff] 0.0
      %45 = vst [vmem:[#allocation2 + $0x90] sm:$0xff] 0.0
      %46 = vst [vmem:[#allocation2 + $0x98] sm:$0xff] 0.0
      %47 = vst [vmem:[#allocation2 + $0xa0] sm:$0xff] 0.0
      %48 = vst [vmem:[#allocation2 + $0xa8] sm:$0xff] 0.0
      %49 = vst [vmem:[#allocation2 + $0xb0] sm:$0xff] 0.0
      %50 = vst [vmem:[#allocation2 + $0xb8] sm:$0xff] 0.0
      %51 = vst [vmem:[#allocation2 + $0xc0] sm:$0xff] 0.0
      %52 = vst [vmem:[#allocation2 + $0xc8] sm:$0xff] 0.0
      %53 = vst [vmem:[#allocation2 + $0xd0] sm:$0xff] 0.0
      %54 = vst [vmem:[#allocation2 + $0xd8] sm:$0xff] 0.0
      %55 = vst [vmem:[#allocation2 + $0xe0] sm:$0xff] 0.0
      %56 = vst [vmem:[#allocation2 + $0xe8] sm:$0xff] 0.0
      %57 = vst [vmem:[#allocation2 + $0xf0] sm:$0xff] 0.0
      %58 = vst [vmem:[#allocation2 + $0xf8] sm:$0xff] 0.0
      %59 = vst [vmem:[#allocation2 + $0x100] sm:$0xff] 0.0
      %60 = vst [vmem:[#allocation2 + $0x108] sm:$0xff] 0.0
      %61 = vst [vmem:[#allocation2 + $0x110] sm:$0xff] 0.0
      %62 = vst [vmem:[#allocation2 + $0x118] sm:$0xff] 0.0
      %63 = vst [vmem:[#allocation2 + $0x120] sm:$0xff] 0.0
      %64 = vst [vmem:[#allocation2 + $0x128] sm:$0xff] 0.0
      %65 = vst [vmem:[#allocation2 + $0x130] sm:$0xff] 0.0
      %66 = vst [vmem:[#allocation2 + $0x138] sm:$0xff] 0.0
      %67 = vst [vmem:[#allocation2 + $0x140] sm:$0xff] 0.0
      %68 = vst [vmem:[#allocation2 + $0x148] sm:$0xff] 0.0
      %69 = vst [vmem:[#allocation2 + $0x150] sm:$0xff] 0.0
      %70 = vst [vmem:[#allocation2 + $0x158] sm:$0xff] 0.0
      %71 = vst [vmem:[#allocation2 + $0x160] sm:$0xff] 0.0
      %72 = vst [vmem:[#allocation2 + $0x168] sm:$0xff] 0.0
      %73 = vst [vmem:[#allocation2 + $0x170] sm:$0xff] 0.0
      %74 = vst [vmem:[#allocation2 + $0x178] sm:$0xff] 0.0
      %75 = vst [vmem:[#allocation2 + $0x180] sm:$0xff] 0.0
      %76 = vst [vmem:[#allocation2 + $0x188] sm:$0xff] 0.0
      %77 = vst [vmem:[#allocation2 + $0x190] sm:$0xff] 0.0
      %78 = vst [vmem:[#allocation2 + $0x198] sm:$0xff] 0.0
      %79 = vst [vmem:[#allocation2 + $0x1a0] sm:$0xff] 0.0
      %80 = vst [vmem:[#allocation2 + $0x1a8] sm:$0xff] 0.0
      %81 = vst [vmem:[#allocation2 + $0x1b0] sm:$0xff] 0.0
      %82 = vst [vmem:[#allocation2 + $0x1b8] sm:$0xff] 0.0
      %83 = vst [vmem:[#allocation2 + $0x1c0] sm:$0xff] 0.0
      %84 = vst [vmem:[#allocation2 + $0x1c8] sm:$0xff] 0.0
      %85 = vst [vmem:[#allocation2 + $0x1d0] sm:$0xff] 0.0
      %86 = vst [vmem:[#allocation2 + $0x1d8] sm:$0xff] 0.0
      %87 = vst [vmem:[#allocation2 + $0x1e0] sm:$0xff] 0.0
      %88 = vst [vmem:[#allocation2 + $0x1e8] sm:$0xff] 0.0
      %89 = vst [vmem:[#allocation2 + $0x1f0] sm:$0xff] 0.0
      %90 = vst [vmem:[#allocation2 + $0x1f8] sm:$0xff] 0.0
      %91 = vst [vmem:[#allocation2 + $0x200] sm:$0xff] 0.0
      %92 = vst [vmem:[#allocation2 + $0x208] sm:$0xff] 0.0
      %93 = vst [vmem:[#allocation2 + $0x210] sm:$0xff] 0.0
      %94 = vst [vmem:[#allocation2 + $0x218] sm:$0xff] 0.0
      %95 = vst [vmem:[#allocation2 + $0x220] sm:$0xff] 0.0
      %96 = vst [vmem:[#allocation2 + $0x228] sm:$0xff] 0.0
      %97 = vst [vmem:[#allocation2 + $0x230] sm:$0xff] 0.0
      %98 = vst [vmem:[#allocation2 + $0x238] sm:$0xff] 0.0
    $region13: #{tpu_custom_call.1} parent=1 // pred_fallthru
      _
    %v99 = vld [vmem:[#allocation4] sm:$0xff]
    %v100 = vld [vmem:[#allocation4 + $0x8] sm:$0xff]
    %v101 = vld [vmem:[#allocation4 + $0x10] sm:$0xff]
    %v102 = vld [vmem:[#allocation4 + $0x18] sm:$0xff]
    %v103 = vld [vmem:[#allocation4 + $0x20] sm:$0xff]
    %v104 = vld [vmem:[#allocation4 + $0x28] sm:$0xff]
    %v105 = vld [vmem:[#allocation4 + $0x30] sm:$0xff]
    %v106 = vld [vmem:[#allocation4 + $0x38] sm:$0xff]
    %v107 = vld [vmem:[#allocation4 + $0x40] sm:$0xff]
    %v108 = vld [vmem:[#allocation4 + $0x48] sm:$0xff]
    %v109 = vld [vmem:[#allocation4 + $0x50] sm:$0xff]
    %v110 = vld [vmem:[#allocation4 + $0x58] sm:$0xff]
    %v111 = vld [vmem:[#allocation4 + $0x60] sm:$0xff]
    %v112 = vld [vmem:[#allocation4 + $0x68] sm:$0xff]
    %v113 = vld [vmem:[#allocation4 + $0x70] sm:$0xff]
    %v114 = vld [vmem:[#allocation4 + $0x78] sm:$0xff]
    %v115 = vld [vmem:[#allocation4 + $0x80] sm:$0xff]
    %v116 = vld [vmem:[#allocation4 + $0x88] sm:$0xff]
    %v117 = vld [vmem:[#allocation4 + $0x90] sm:$0xff]
    %v118 = vld [vmem:[#allocation4 + $0x98] sm:$0xff]
    %v119 = vld [vmem:[#allocation4 + $0xa0] sm:$0xff]
    %v120 = vld [vmem:[#allocation4 + $0xa8] sm:$0xff]
    %v121 = vld [vmem:[#allocation4 + $0xb0] sm:$0xff]
    %v122 = vld [vmem:[#allocation4 + $0xb8] sm:$0xff]
    %v123 = vld [vmem:[#allocation4 + $0xc0] sm:$0xff]
    %v124 = vld [vmem:[#allocation4 + $0xc8] sm:$0xff]
    %v125 = vld [vmem:[#allocation4 + $0xd0] sm:$0xff]
    %v126 = vld [vmem:[#allocation4 + $0xd8] sm:$0xff]
    %v127 = vld [vmem:[#allocation4 + $0xe0] sm:$0xff]
    %v128 = vld [vmem:[#allocation4 + $0xe8] sm:$0xff]
    %v129 = vld [vmem:[#allocation4 + $0xf0] sm:$0xff]
    %v130 = vld [vmem:[#allocation4 + $0xf8] sm:$0xff]
    %s131 = scalar_lea.vmem [#allocation2], 32
    %132 = vst [vmem:[%s131 + $0x8] sm:$0xff] %v99
    %133 = vst [vmem:[%s131 + $0x10] sm:$0xff] %v100
    %134 = vst [vmem:[%s131 + $0x28] sm:$0xff] %v101
    %135 = vst [vmem:[%s131 + $0x30] sm:$0xff] %v102
    %136 = vst [vmem:[%s131 + $0x48] sm:$0xff] %v103
    %137 = vst [vmem:[%s131 + $0x50] sm:$0xff] %v104
    %138 = vst [vmem:[%s131 + $0x68] sm:$0xff] %v105
    %139 = vst [vmem:[%s131 + $0x70] sm:$0xff] %v106
    %140 = vst [vmem:[%s131 + $0x88] sm:$0xff] %v107
    %141 = vst [vmem:[%s131 + $0x90] sm:$0xff] %v108
    %142 = vst [vmem:[%s131 + $0xa8] sm:$0xff] %v109
    %143 = vst [vmem:[%s131 + $0xb0] sm:$0xff] %v110
    %144 = vst [vmem:[%s131 + $0xc8] sm:$0xff] %v111
    %145 = vst [vmem:[%s131 + $0xd0] sm:$0xff] %v112
    %146 = vst [vmem:[%s131 + $0xe8] sm:$0xff] %v113
    %147 = vst [vmem:[%s131 + $0xf0] sm:$0xff] %v114
    %148 = vst [vmem:[%s131 + $0x108] sm:$0xff] %v115
    %149 = vst [vmem:[%s131 + $0x110] sm:$0xff] %v116
    %150 = vst [vmem:[%s131 + $0x128] sm:$0xff] %v117
    %151 = vst [vmem:[%s131 + $0x130] sm:$0xff] %v118
    %152 = vst [vmem:[%s131 + $0x148] sm:$0xff] %v119
    %153 = vst [vmem:[%s131 + $0x150] sm:$0xff] %v120
    %154 = vst [vmem:[%s131 + $0x168] sm:$0xff] %v121
    %155 = vst [vmem:[%s131 + $0x170] sm:$0xff] %v122
    %156 = vst [vmem:[%s131 + $0x188] sm:$0xff] %v123
    %157 = vst [vmem:[%s131 + $0x190] sm:$0xff] %v124
    %158 = vst [vmem:[%s131 + $0x1a8] sm:$0xff] %v125
    %159 = vst [vmem:[%s131 + $0x1b0] sm:$0xff] %v126
    %160 = vst [vmem:[%s131 + $0x1c8] sm:$0xff] %v127
    %161 = vst [vmem:[%s131 + $0x1d0] sm:$0xff] %v128
    %162 = vst [vmem:[%s131 + $0x1e8] sm:$0xff] %v129
    %163 = vst [vmem:[%s131 + $0x1f0] sm:$0xff] %v130
    %v164 = vld [vmem:[#allocation2] sm:$0xff]
    %v165 = vld [vmem:[#allocation2 + $0x8] sm:$0xff]
    %v166 = vld [vmem:[#allocation2 + $0x10] sm:$0xff]
    %v167 = vld [vmem:[#allocation2 + $0x18] sm:$0xff]
    %v168 = vld [vmem:[#allocation2 + $0x20] sm:$0xff]
    %v169 = vld [vmem:[#allocation2 + $0x28] sm:$0xff]
    %v170 = vld [vmem:[#allocation2 + $0x30] sm:$0xff]
    %v171 = vld [vmem:[#allocation2 + $0x38] sm:$0xff]
    %v172 = vld [vmem:[#allocation2 + $0x40] sm:$0xff]
    %v173 = vld [vmem:[#allocation2 + $0x48] sm:$0xff]
    %v174 = vld [vmem:[#allocation2 + $0x50] sm:$0xff]
    %v175 = vld [vmem:[#allocation2 + $0x58] sm:$0xff]
    %v176 = vld [vmem:[#allocation2 + $0x60] sm:$0xff]
    %v177 = vld [vmem:[#allocation2 + $0x68] sm:$0xff]
    %v178 = vld [vmem:[#allocation2 + $0x70] sm:$0xff]
    %v179 = vld [vmem:[#allocation2 + $0x78] sm:$0xff]
    %v180 = vld [vmem:[#allocation2 + $0x80] sm:$0xff]
    %v181 = vld [vmem:[#allocation2 + $0x88] sm:$0xff]
    %v182 = vld [vmem:[#allocation2 + $0x90] sm:$0xff]
    %v183 = vld [vmem:[#allocation2 + $0x98] sm:$0xff]
    %v184 = vld [vmem:[#allocation2 + $0xa0] sm:$0xff]
    %v185 = vld [vmem:[#allocation2 + $0xa8] sm:$0xff]
    %v186 = vld [vmem:[#allocation2 + $0xb0] sm:$0xff]
    %v187 = vld [vmem:[#allocation2 + $0xb8] sm:$0xff]
    %v188 = vld [vmem:[#allocation2 + $0xc0] sm:$0xff]
    %v189 = vld [vmem:[#allocation2 + $0xc8] sm:$0xff]
    %v190 = vld [vmem:[#allocation2 + $0xd0] sm:$0xff]
    %v191 = vld [vmem:[#allocation2 + $0xd8] sm:$0xff]
    %v192 = vld [vmem:[#allocation2 + $0xe0] sm:$0xff]
    %v193 = vld [vmem:[#allocation2 + $0xe8] sm:$0xff]
    %v194 = vld [vmem:[#allocation2 + $0xf0] sm:$0xff]
    %v195 = vld [vmem:[#allocation2 + $0xf8] sm:$0xff]
    %v196 = vld [vmem:[#allocation2 + $0x100] sm:$0xff]
    %v197 = vld [vmem:[#allocation2 + $0x108] sm:$0xff]
    %v198 = vld [vmem:[#allocation2 + $0x110] sm:$0xff]
    %v199 = vld [vmem:[#allocation2 + $0x118] sm:$0xff]
    %v200 = vld [vmem:[#allocation2 + $0x120] sm:$0xff]
    %v201 = vld [vmem:[#allocation2 + $0x128] sm:$0xff]
    %v202 = vld [vmem:[#allocation2 + $0x130] sm:$0xff]
    %v203 = vld [vmem:[#allocation2 + $0x138] sm:$0xff]
    %v204 = vld [vmem:[#allocation2 + $0x140] sm:$0xff]
    %v205 = vld [vmem:[#allocation2 + $0x148] sm:$0xff]
    %v206 = vld [vmem:[#allocation2 + $0x150] sm:$0xff]
    %v207 = vld [vmem:[#allocation2 + $0x158] sm:$0xff]
    %v208 = vld [vmem:[#allocation2 + $0x160] sm:$0xff]
    %v209 = vld [vmem:[#allocation2 + $0x168] sm:$0xff]
    %v210 = vld [vmem:[#allocation2 + $0x170] sm:$0xff]
    %v211 = vld [vmem:[#allocation2 + $0x178] sm:$0xff]
    %v212 = vld [vmem:[#allocation2 + $0x180] sm:$0xff]
    %v213 = vld [vmem:[#allocation2 + $0x188] sm:$0xff]
    %v214 = vld [vmem:[#allocation2 + $0x190] sm:$0xff]
    %v215 = vld [vmem:[#allocation2 + $0x198] sm:$0xff]
    %v216 = vld [vmem:[#allocation2 + $0x1a0] sm:$0xff]
    %v217 = vld [vmem:[#allocation2 + $0x1a8] sm:$0xff]
    %v218 = vld [vmem:[#allocation2 + $0x1b0] sm:$0xff]
    %v219 = vld [vmem:[#allocation2 + $0x1b8] sm:$0xff]
    %v220 = vld [vmem:[#allocation2 + $0x1c0] sm:$0xff]
    %v221 = vld [vmem:[#allocation2 + $0x1c8] sm:$0xff]
    %v222 = vld [vmem:[#allocation2 + $0x1d0] sm:$0xff]
    %v223 = vld [vmem:[#allocation2 + $0x1d8] sm:$0xff]
    %v224 = vld [vmem:[#allocation2 + $0x1e0] sm:$0xff]
    %v225 = vld [vmem:[#allocation2 + $0x1e8] sm:$0xff]
    %v226 = vld [vmem:[#allocation2 + $0x1f0] sm:$0xff]
    %v227 = vld [vmem:[#allocation2 + $0x1f8] sm:$0xff]
    %v228 = vld [vmem:[#allocation2 + $0x200] sm:$0xff]
    %v229 = vld [vmem:[#allocation2 + $0x208] sm:$0xff]
    %v230 = vld [vmem:[#allocation2 + $0x210] sm:$0xff]
    %v231 = vld [vmem:[#allocation2 + $0x218] sm:$0xff]
    %v232 = vld [vmem:[#allocation2 + $0x220] sm:$0xff]
    %v233 = vld [vmem:[#allocation2 + $0x228] sm:$0xff]
    %v234 = vld [vmem:[#allocation2 + $0x230] sm:$0xff]
    %v235 = vld [vmem:[#allocation2 + $0x238] sm:$0xff]
    %v236 = vrot.slane %v164, 7
    %v237 = vrot.slane %v168, 7
    %v238 = vrot.slane %v172, 7
    %v239 = vrot.slane %v176, 7
    %v240 = vrot.slane %v180, 7
    %v241 = vrot.slane %v184, 7
    %v242 = vrot.slane %v188, 7
    %v243 = vrot.slane %v192, 7
    %v244 = vrot.slane %v196, 7
    %v245 = vrot.slane %v200, 7
    %v246 = vrot.slane %v204, 7
    %v247 = vrot.slane %v208, 7
    %v248 = vrot.slane %v212, 7
    %v249 = vrot.slane %v216, 7
    %v250 = vrot.slane %v220, 7
    %v251 = vrot.slane %v224, 7
    %v252 = vrot.slane %v228, 7
    %v253 = vrot.slane %v232, 7
    %v254 = vrot.slane %v165, 7
    %v255 = vrot.slane %v169, 7
    %v256 = vrot.slane %v173, 7
    %v257 = vrot.slane %v177, 7
    %v258 = vrot.slane %v181, 7
    %v259 = vrot.slane %v185, 7
    %v260 = vrot.slane %v189, 7
    %v261 = vrot.slane %v193, 7
    %v262 = vrot.slane %v197, 7
    %v263 = vrot.slane %v201, 7
    %v264 = vrot.slane %v205, 7
    %v265 = vrot.slane %v209, 7
    %v266 = vrot.slane %v213, 7
    %v267 = vrot.slane %v217, 7
    %v268 = vrot.slane %v221, 7
    %v269 = vrot.slane %v225, 7
    %v270 = vrot.slane %v229, 7
    %v271 = vrot.slane %v233, 7
    %v272 = vrot.slane %v166, 7
    %v273 = vrot.slane %v170, 7
    %v274 = vrot.slane %v174, 7
    %v275 = vrot.slane %v178, 7
    %v276 = vrot.slane %v182, 7
    %v277 = vrot.slane %v186, 7
    %v278 = vrot.slane %v190, 7
    %v279 = vrot.slane %v194, 7
    %v280 = vrot.slane %v198, 7
    %v281 = vrot.slane %v202, 7
    %v282 = vrot.slane %v206, 7
    %v283 = vrot.slane %v210, 7
    %v284 = vrot.slane %v214, 7
    %v285 = vrot.slane %v218, 7
    %v286 = vrot.slane %v222, 7
    %v287 = vrot.slane %v226, 7
    %v288 = vrot.slane %v230, 7
    %v289 = vrot.slane %v234, 7
    %v290 = vlaneseq
    %v291 = vshrl.u32 %v290, 7
    %vm292 = vcmp.lt.s32.totalorder %v291, 1
    %v293 = vsel %vm292, %v254, %v272
    %v294 = vsel %vm292, %v255, %v273
    %v295 = vsel %vm292, %v256, %v274
    %v296 = vsel %vm292, %v257, %v275
    %v297 = vsel %vm292, %v258, %v276
    %v298 = vsel %vm292, %v259, %v277
    %v299 = vsel %vm292, %v260, %v278
    %v300 = vsel %vm292, %v261, %v279
    %v301 = vsel %vm292, %v262, %v280
    %v302 = vsel %vm292, %v263, %v281
    %v303 = vsel %vm292, %v264, %v282
    %v304 = vsel %vm292, %v265, %v283
    %v305 = vsel %vm292, %v266, %v284
    %v306 = vsel %vm292, %v267, %v285
    %v307 = vsel %vm292, %v268, %v286
    %v308 = vsel %vm292, %v269, %v287
    %v309 = vsel %vm292, %v270, %v288
    %v310 = vsel %vm292, %v271, %v289
    %v311 = vsel %vm292, %v236, %v254
    %v312 = vsel %vm292, %v237, %v255
    %v313 = vsel %vm292, %v238, %v256
    %v314 = vsel %vm292, %v239, %v257
    %v315 = vsel %vm292, %v240, %v258
    %v316 = vsel %vm292, %v241, %v259
    %v317 = vsel %vm292, %v242, %v260
    %v318 = vsel %vm292, %v243, %v261
    %v319 = vsel %vm292, %v244, %v262
    %v320 = vsel %vm292, %v245, %v263
    %v321 = vsel %vm292, %v246, %v264
    %v322 = vsel %vm292, %v247, %v265
    %v323 = vsel %vm292, %v248, %v266
    %v324 = vsel %vm292, %v249, %v267
    %v325 = vsel %vm292, %v250, %v268
    %v326 = vsel %vm292, %v251, %v269
    %v327 = vsel %vm292, %v252, %v270
    %v328 = vsel %vm292, %v253, %v271
    %v329 = vadd.f32 %v311, %v165
    %v330 = vadd.f32 %v293, %v166
    %v331 = vadd.f32 %v312, %v169
    %v332 = vadd.f32 %v294, %v170
    %v333 = vadd.f32 %v313, %v173
    %v334 = vadd.f32 %v295, %v174
    %v335 = vadd.f32 %v314, %v177
    %v336 = vadd.f32 %v296, %v178
    %v337 = vadd.f32 %v315, %v181
    %v338 = vadd.f32 %v297, %v182
    %v339 = vadd.f32 %v316, %v185
    %v340 = vadd.f32 %v298, %v186
    %v341 = vadd.f32 %v317, %v189
    %v342 = vadd.f32 %v299, %v190
    %v343 = vadd.f32 %v318, %v193
    %v344 = vadd.f32 %v300, %v194
    %v345 = vadd.f32 %v319, %v197
    %v346 = vadd.f32 %v301, %v198
    %v347 = vadd.f32 %v320, %v201
    %v348 = vadd.f32 %v302, %v202
    %v349 = vadd.f32 %v321, %v205
    %v350 = vadd.f32 %v303, %v206
    %v351 = vadd.f32 %v322, %v209
    %v352 = vadd.f32 %v304, %v210
    %v353 = vadd.f32 %v323, %v213
    %v354 = vadd.f32 %v305, %v214
    %v355 = vadd.f32 %v324, %v217
    %v356 = vadd.f32 %v306, %v218
    %v357 = vadd.f32 %v325, %v221
    %v358 = vadd.f32 %v307, %v222
    %v359 = vadd.f32 %v326, %v225
    %v360 = vadd.f32 %v308, %v226
    %v361 = vadd.f32 %v327, %v229
    %v362 = vadd.f32 %v309, %v230
    %v363 = vadd.f32 %v328, %v233
    %v364 = vadd.f32 %v310, %v234
    %v365 = vrot.slane %v165, 1
    %v366 = vrot.slane %v169, 1
    %v367 = vrot.slane %v173, 1
    %v368 = vrot.slane %v177, 1
    %v369 = vrot.slane %v181, 1
    %v370 = vrot.slane %v185, 1
    %v371 = vrot.slane %v189, 1
    %v372 = vrot.slane %v193, 1
    %v373 = vrot.slane %v197, 1
    %v374 = vrot.slane %v201, 1
    %v375 = vrot.slane %v205, 1
    %v376 = vrot.slane %v209, 1
    %v377 = vrot.slane %v213, 1
    %v378 = vrot.slane %v217, 1
    %v379 = vrot.slane %v221, 1
    %v380 = vrot.slane %v225, 1
    %v381 = vrot.slane %v229, 1
    %v382 = vrot.slane %v233, 1
    %v383 = vrot.slane %v166, 1
    %v384 = vrot.slane %v170, 1
    %v385 = vrot.slane %v174, 1
    %v386 = vrot.slane %v178, 1
    %v387 = vrot.slane %v182, 1
    %v388 = vrot.slane %v186, 1
    %v389 = vrot.slane %v190, 1
    %v390 = vrot.slane %v194, 1
    %v391 = vrot.slane %v198, 1
    %v392 = vrot.slane %v202, 1
    %v393 = vrot.slane %v206, 1
    %v394 = vrot.slane %v210, 1
    %v395 = vrot.slane %v214, 1
    %v396 = vrot.slane %v218, 1
    %v397 = vrot.slane %v222, 1
    %v398 = vrot.slane %v226, 1
    %v399 = vrot.slane %v230, 1
    %v400 = vrot.slane %v234, 1
    %v401 = vrot.slane %v167, 1
    %v402 = vrot.slane %v171, 1
    %v403 = vrot.slane %v175, 1
    %v404 = vrot.slane %v179, 1
    %v405 = vrot.slane %v183, 1
    %v406 = vrot.slane %v187, 1
    %v407 = vrot.slane %v191, 1
    %v408 = vrot.slane %v195, 1
    %v409 = vrot.slane %v199, 1
    %v410 = vrot.slane %v203, 1
    %v411 = vrot.slane %v207, 1
    %v412 = vrot.slane %v211, 1
    %v413 = vrot.slane %v215, 1
    %v414 = vrot.slane %v219, 1
    %v415 = vrot.slane %v223, 1
    %v416 = vrot.slane %v227, 1
    %v417 = vrot.slane %v231, 1
    %v418 = vrot.slane %v235, 1
    %vm419 = vcmp.lt.s32.totalorder %v291, 7
    %v420 = vsel %vm419, %v383, %v401
    %v421 = vsel %vm419, %v384, %v402
    %v422 = vsel %vm419, %v385, %v403
    %v423 = vsel %vm419, %v386, %v404
    %v424 = vsel %vm419, %v387, %v405
    %v425 = vsel %vm419, %v388, %v406
    %v426 = vsel %vm419, %v389, %v407
    %v427 = vsel %vm419, %v390, %v408
    %v428 = vsel %vm419, %v391, %v409
    %v429 = vsel %vm419, %v392, %v410
    %v430 = vsel %vm419, %v393, %v411
    %v431 = vsel %vm419, %v394, %v412
    %v432 = vsel %vm419, %v395, %v413
    %v433 = vsel %vm419, %v396, %v414
    %v434 = vsel %vm419, %v397, %v415
    %v435 = vsel %vm419, %v398, %v416
    %v436 = vsel %vm419, %v399, %v417
    %v437 = vsel %vm419, %v400, %v418
    %v438 = vsel %vm419, %v365, %v383
    %v439 = vsel %vm419, %v366, %v384
    %v440 = vsel %vm419, %v367, %v385
    %v441 = vsel %vm419, %v368, %v386
    %v442 = vsel %vm419, %v369, %v387
    %v443 = vsel %vm419, %v370, %v388
    %v444 = vsel %vm419, %v371, %v389
    %v445 = vsel %vm419, %v372, %v390
    %v446 = vsel %vm419, %v373, %v391
    %v447 = vsel %vm419, %v374, %v392
    %v448 = vsel %vm419, %v375, %v393
    %v449 = vsel %vm419, %v376, %v394
    %v450 = vsel %vm419, %v377, %v395
    %v451 = vsel %vm419, %v378, %v396
    %v452 = vsel %vm419, %v379, %v397
    %v453 = vsel %vm419, %v380, %v398
    %v454 = vsel %vm419, %v381, %v399
    %v455 = vsel %vm419, %v382, %v400
    %v456 = vadd.f32 %v329, %v438
    %v457 = vadd.f32 %v330, %v420
    %v458 = vadd.f32 %v331, %v439
    %v459 = vadd.f32 %v332, %v421
    %v460 = vadd.f32 %v333, %v440
    %v461 = vadd.f32 %v334, %v422
    %v462 = vadd.f32 %v335, %v441
    %v463 = vadd.f32 %v336, %v423
    %v464 = vadd.f32 %v337, %v442
    %v465 = vadd.f32 %v338, %v424
    %v466 = vadd.f32 %v339, %v443
    %v467 = vadd.f32 %v340, %v425
    %v468 = vadd.f32 %v341, %v444
    %v469 = vadd.f32 %v342, %v426
    %v470 = vadd.f32 %v343, %v445
    %v471 = vadd.f32 %v344, %v427
    %v472 = vadd.f32 %v345, %v446
    %v473 = vadd.f32 %v346, %v428
    %v474 = vadd.f32 %v347, %v447
    %v475 = vadd.f32 %v348, %v429
    %v476 = vadd.f32 %v349, %v448
    %v477 = vadd.f32 %v350, %v430
    %v478 = vadd.f32 %v351, %v449
    %v479 = vadd.f32 %v352, %v431
    %v480 = vadd.f32 %v353, %v450
    %v481 = vadd.f32 %v354, %v432
    %v482 = vadd.f32 %v355, %v451
    %v483 = vadd.f32 %v356, %v433
    %v484 = vadd.f32 %v357, %v452
    %v485 = vadd.f32 %v358, %v434
    %v486 = vadd.f32 %v359, %v453
    %v487 = vadd.f32 %v360, %v435
    %v488 = vadd.f32 %v361, %v454
    %v489 = vadd.f32 %v362, %v436
    %v490 = vadd.f32 %v363, %v455
    %v491 = vadd.f32 %v364, %v437
    %492 = vst [vmem:[#allocation3] sm:$0xff] %v456
    %493 = vst [vmem:[#allocation3 + $0x8] sm:$0xff] %v457
    %494 = vst [vmem:[#allocation3 + $0x10] sm:$0xff] %v458
    %495 = vst [vmem:[#allocation3 + $0x18] sm:$0xff] %v459
    %496 = vst [vmem:[#allocation3 + $0x20] sm:$0xff] %v460
    %497 = vst [vmem:[#allocation3 + $0x28] sm:$0xff] %v461
    %498 = vst [vmem:[#allocation3 + $0x30] sm:$0xff] %v462
    %499 = vst [vmem:[#allocation3 + $0x38] sm:$0xff] %v463
    %500 = vst [vmem:[#allocation3 + $0x40] sm:$0xff] %v464
    %501 = vst [vmem:[#allocation3 + $0x48] sm:$0xff] %v465
    %502 = vst [vmem:[#allocation3 + $0x50] sm:$0xff] %v466
    %503 = vst [vmem:[#allocation3 + $0x58] sm:$0xff] %v467
    %504 = vst [vmem:[#allocation3 + $0x60] sm:$0xff] %v468
    %505 = vst [vmem:[#allocation3 + $0x68] sm:$0xff] %v469
    %506 = vst [vmem:[#allocation3 + $0x70] sm:$0xff] %v470
    %507 = vst [vmem:[#allocation3 + $0x78] sm:$0xff] %v471
    %508 = vst [vmem:[#allocation3 + $0x80] sm:$0xff] %v472
    %509 = vst [vmem:[#allocation3 + $0x88] sm:$0xff] %v473
    %510 = vst [vmem:[#allocation3 + $0x90] sm:$0xff] %v474
    %511 = vst [vmem:[#allocation3 + $0x98] sm:$0xff] %v475
    %512 = vst [vmem:[#allocation3 + $0xa0] sm:$0xff] %v476
    %513 = vst [vmem:[#allocation3 + $0xa8] sm:$0xff] %v477
    %514 = vst [vmem:[#allocation3 + $0xb0] sm:$0xff] %v478
    %515 = vst [vmem:[#allocation3 + $0xb8] sm:$0xff] %v479
    %516 = vst [vmem:[#allocation3 + $0xc0] sm:$0xff] %v480
    %517 = vst [vmem:[#allocation3 + $0xc8] sm:$0xff] %v481
    %518 = vst [vmem:[#allocation3 + $0xd0] sm:$0xff] %v482
    %519 = vst [vmem:[#allocation3 + $0xd8] sm:$0xff] %v483
    %520 = vst [vmem:[#allocation3 + $0xe0] sm:$0xff] %v484
    %521 = vst [vmem:[#allocation3 + $0xe8] sm:$0xff] %v485
    %522 = vst [vmem:[#allocation3 + $0xf0] sm:$0xff] %v486
    %523 = vst [vmem:[#allocation3 + $0xf8] sm:$0xff] %v487
    %524 = vst [vmem:[#allocation3 + $0x100] sm:$0xff] %v488
    %525 = vst [vmem:[#allocation3 + $0x108] sm:$0xff] %v489
    %526 = vst [vmem:[#allocation3 + $0x110] sm:$0xff] %v490
    %527 = vst [vmem:[#allocation3 + $0x118] sm:$0xff] %v491
    %v528 = vld [vmem:[#allocation3] sm:$0xff]
    %v529 = vld [vmem:[#allocation3 + $0x8] sm:$0xff]
    %v530 = vld [vmem:[#allocation3 + $0x10] sm:$0xff]
    %v531 = vld [vmem:[#allocation3 + $0x18] sm:$0xff]
    %v532 = vld [vmem:[#allocation3 + $0x20] sm:$0xff]
    %v533 = vld [vmem:[#allocation3 + $0x28] sm:$0xff]
    %v534 = vld [vmem:[#allocation3 + $0x30] sm:$0xff]
    %v535 = vld [vmem:[#allocation3 + $0x38] sm:$0xff]
    %v536 = vld [vmem:[#allocation3 + $0x40] sm:$0xff]
    %v537 = vld [vmem:[#allocation3 + $0x48] sm:$0xff]
    %v538 = vld [vmem:[#allocation3 + $0x50] sm:$0xff]
    %v539 = vld [vmem:[#allocation3 + $0x58] sm:$0xff]
    %v540 = vld [vmem:[#allocation3 + $0x60] sm:$0xff]
    %v541 = vld [vmem:[#allocation3 + $0x68] sm:$0xff]
    %v542 = vld [vmem:[#allocation3 + $0x70] sm:$0xff]
    %v543 = vld [vmem:[#allocation3 + $0x78] sm:$0xff]
    %v544 = vld [vmem:[#allocation3 + $0x80] sm:$0xff]
    %v545 = vld [vmem:[#allocation3 + $0x88] sm:$0xff]
    %v546 = vld [vmem:[#allocation3 + $0x90] sm:$0xff]
    %v547 = vld [vmem:[#allocation3 + $0x98] sm:$0xff]
    %v548 = vld [vmem:[#allocation3 + $0xa0] sm:$0xff]
    %v549 = vld [vmem:[#allocation3 + $0xa8] sm:$0xff]
    %v550 = vld [vmem:[#allocation3 + $0xb0] sm:$0xff]
    %v551 = vld [vmem:[#allocation3 + $0xb8] sm:$0xff]
    %v552 = vld [vmem:[#allocation3 + $0xc0] sm:$0xff]
    %v553 = vld [vmem:[#allocation3 + $0xc8] sm:$0xff]
    %v554 = vld [vmem:[#allocation3 + $0xd0] sm:$0xff]
    %v555 = vld [vmem:[#allocation3 + $0xd8] sm:$0xff]
    %v556 = vld [vmem:[#allocation3 + $0xe0] sm:$0xff]
    %v557 = vld [vmem:[#allocation3 + $0xe8] sm:$0xff]
    %v558 = vld [vmem:[#allocation3 + $0xf0] sm:$0xff]
    %v559 = vld [vmem:[#allocation3 + $0xf8] sm:$0xff]
    %s560 = scalar_lea.vmem [#allocation3], 16
    %v561 = vld [vmem:[%s560] sm:$0xff]
    %v562 = vld [vmem:[%s560 + $0x8] sm:$0xff]
    %v563 = vld [vmem:[%s560 + $0x10] sm:$0xff]
    %v564 = vld [vmem:[%s560 + $0x18] sm:$0xff]
    %v565 = vld [vmem:[%s560 + $0x20] sm:$0xff]
    %v566 = vld [vmem:[%s560 + $0x28] sm:$0xff]
    %v567 = vld [vmem:[%s560 + $0x30] sm:$0xff]
    %v568 = vld [vmem:[%s560 + $0x38] sm:$0xff]
    %v569 = vld [vmem:[%s560 + $0x40] sm:$0xff]
    %v570 = vld [vmem:[%s560 + $0x48] sm:$0xff]
    %v571 = vld [vmem:[%s560 + $0x50] sm:$0xff]
    %v572 = vld [vmem:[%s560 + $0x58] sm:$0xff]
    %v573 = vld [vmem:[%s560 + $0x60] sm:$0xff]
    %v574 = vld [vmem:[%s560 + $0x68] sm:$0xff]
    %v575 = vld [vmem:[%s560 + $0x70] sm:$0xff]
    %v576 = vld [vmem:[%s560 + $0x78] sm:$0xff]
    %v577 = vld [vmem:[%s560 + $0x80] sm:$0xff]
    %v578 = vld [vmem:[%s560 + $0x88] sm:$0xff]
    %v579 = vld [vmem:[%s560 + $0x90] sm:$0xff]
    %v580 = vld [vmem:[%s560 + $0x98] sm:$0xff]
    %v581 = vld [vmem:[%s560 + $0xa0] sm:$0xff]
    %v582 = vld [vmem:[%s560 + $0xa8] sm:$0xff]
    %v583 = vld [vmem:[%s560 + $0xb0] sm:$0xff]
    %v584 = vld [vmem:[%s560 + $0xb8] sm:$0xff]
    %v585 = vld [vmem:[%s560 + $0xc0] sm:$0xff]
    %v586 = vld [vmem:[%s560 + $0xc8] sm:$0xff]
    %v587 = vld [vmem:[%s560 + $0xd0] sm:$0xff]
    %v588 = vld [vmem:[%s560 + $0xd8] sm:$0xff]
    %v589 = vld [vmem:[%s560 + $0xe0] sm:$0xff]
    %v590 = vld [vmem:[%s560 + $0xe8] sm:$0xff]
    %v591 = vld [vmem:[%s560 + $0xf0] sm:$0xff]
    %v592 = vld [vmem:[%s560 + $0xf8] sm:$0xff]
    %v593 = vadd.f32 %v528, %v561
    %v594 = vadd.f32 %v529, %v562
    %v595 = vadd.f32 %v530, %v563
    %v596 = vadd.f32 %v531, %v564
    %v597 = vadd.f32 %v532, %v565
    %v598 = vadd.f32 %v533, %v566
    %v599 = vadd.f32 %v534, %v567
    %v600 = vadd.f32 %v535, %v568
    %v601 = vadd.f32 %v536, %v569
    %v602 = vadd.f32 %v537, %v570
    %v603 = vadd.f32 %v538, %v571
    %v604 = vadd.f32 %v539, %v572
    %v605 = vadd.f32 %v540, %v573
    %v606 = vadd.f32 %v541, %v574
    %v607 = vadd.f32 %v542, %v575
    %v608 = vadd.f32 %v543, %v576
    %v609 = vadd.f32 %v544, %v577
    %v610 = vadd.f32 %v545, %v578
    %v611 = vadd.f32 %v546, %v579
    %v612 = vadd.f32 %v547, %v580
    %v613 = vadd.f32 %v548, %v581
    %v614 = vadd.f32 %v549, %v582
    %v615 = vadd.f32 %v550, %v583
    %v616 = vadd.f32 %v551, %v584
    %v617 = vadd.f32 %v552, %v585
    %v618 = vadd.f32 %v553, %v586
    %v619 = vadd.f32 %v554, %v587
    %v620 = vadd.f32 %v555, %v588
    %v621 = vadd.f32 %v556, %v589
    %v622 = vadd.f32 %v557, %v590
    %v623 = vadd.f32 %v558, %v591
    %v624 = vadd.f32 %v559, %v592
    %s625 = scalar_lea.vmem [#allocation3], 32
    %v626 = vld [vmem:[%s625] sm:$0xff]
    %v627 = vld [vmem:[%s625 + $0x8] sm:$0xff]
    %v628 = vld [vmem:[%s625 + $0x10] sm:$0xff]
    %v629 = vld [vmem:[%s625 + $0x18] sm:$0xff]
    %v630 = vld [vmem:[%s625 + $0x20] sm:$0xff]
    %v631 = vld [vmem:[%s625 + $0x28] sm:$0xff]
    %v632 = vld [vmem:[%s625 + $0x30] sm:$0xff]
    %v633 = vld [vmem:[%s625 + $0x38] sm:$0xff]
    %v634 = vld [vmem:[%s625 + $0x40] sm:$0xff]
    %v635 = vld [vmem:[%s625 + $0x48] sm:$0xff]
    %v636 = vld [vmem:[%s625 + $0x50] sm:$0xff]
    %v637 = vld [vmem:[%s625 + $0x58] sm:$0xff]
    %v638 = vld [vmem:[%s625 + $0x60] sm:$0xff]
    %v639 = vld [vmem:[%s625 + $0x68] sm:$0xff]
    %v640 = vld [vmem:[%s625 + $0x70] sm:$0xff]
    %v641 = vld [vmem:[%s625 + $0x78] sm:$0xff]
    %v642 = vld [vmem:[%s625 + $0x80] sm:$0xff]
    %v643 = vld [vmem:[%s625 + $0x88] sm:$0xff]
    %v644 = vld [vmem:[%s625 + $0x90] sm:$0xff]
    %v645 = vld [vmem:[%s625 + $0x98] sm:$0xff]
    %v646 = vld [vmem:[%s625 + $0xa0] sm:$0xff]
    %v647 = vld [vmem:[%s625 + $0xa8] sm:$0xff]
    %v648 = vld [vmem:[%s625 + $0xb0] sm:$0xff]
    %v649 = vld [vmem:[%s625 + $0xb8] sm:$0xff]
    %v650 = vld [vmem:[%s625 + $0xc0] sm:$0xff]
    %v651 = vld [vmem:[%s625 + $0xc8] sm:$0xff]
    %v652 = vld [vmem:[%s625 + $0xd0] sm:$0xff]
    %v653 = vld [vmem:[%s625 + $0xd8] sm:$0xff]
    %v654 = vld [vmem:[%s625 + $0xe0] sm:$0xff]
    %v655 = vld [vmem:[%s625 + $0xe8] sm:$0xff]
    %v656 = vld [vmem:[%s625 + $0xf0] sm:$0xff]
    %v657 = vld [vmem:[%s625 + $0xf8] sm:$0xff]
    %v658 = vadd.f32 %v593, %v626
    %v659 = vadd.f32 %v594, %v627
    %v660 = vadd.f32 %v595, %v628
    %v661 = vadd.f32 %v596, %v629
    %v662 = vadd.f32 %v597, %v630
    %v663 = vadd.f32 %v598, %v631
    %v664 = vadd.f32 %v599, %v632
    %v665 = vadd.f32 %v600, %v633
    %v666 = vadd.f32 %v601, %v634
    %v667 = vadd.f32 %v602, %v635
    %v668 = vadd.f32 %v603, %v636
    %v669 = vadd.f32 %v604, %v637
    %v670 = vadd.f32 %v605, %v638
    %v671 = vadd.f32 %v606, %v639
    %v672 = vadd.f32 %v607, %v640
    %v673 = vadd.f32 %v608, %v641
    %v674 = vadd.f32 %v609, %v642
    %v675 = vadd.f32 %v610, %v643
    %v676 = vadd.f32 %v611, %v644
    %v677 = vadd.f32 %v612, %v645
    %v678 = vadd.f32 %v613, %v646
    %v679 = vadd.f32 %v614, %v647
    %v680 = vadd.f32 %v615, %v648
    %v681 = vadd.f32 %v616, %v649
    %v682 = vadd.f32 %v617, %v650
    %v683 = vadd.f32 %v618, %v651
    %v684 = vadd.f32 %v619, %v652
    %v685 = vadd.f32 %v620, %v653
    %v686 = vadd.f32 %v621, %v654
    %v687 = vadd.f32 %v622, %v655
    %v688 = vadd.f32 %v623, %v656
    %v689 = vadd.f32 %v624, %v657
    %690 = vst [vmem:[#allocation7] sm:$0xff] %v658
    %691 = vst [vmem:[#allocation7 + $0x8] sm:$0xff] %v659
    %692 = vst [vmem:[#allocation7 + $0x10] sm:$0xff] %v660
    %693 = vst [vmem:[#allocation7 + $0x18] sm:$0xff] %v661
    %694 = vst [vmem:[#allocation7 + $0x20] sm:$0xff] %v662
    %695 = vst [vmem:[#allocation7 + $0x28] sm:$0xff] %v663
    %696 = vst [vmem:[#allocation7 + $0x30] sm:$0xff] %v664
    %697 = vst [vmem:[#allocation7 + $0x38] sm:$0xff] %v665
    %698 = vst [vmem:[#allocation7 + $0x40] sm:$0xff] %v666
    %699 = vst [vmem:[#allocation7 + $0x48] sm:$0xff] %v667
    %700 = vst [vmem:[#allocation7 + $0x50] sm:$0xff] %v668
    %701 = vst [vmem:[#allocation7 + $0x58] sm:$0xff] %v669
    %702 = vst [vmem:[#allocation7 + $0x60] sm:$0xff] %v670
    %703 = vst [vmem:[#allocation7 + $0x68] sm:$0xff] %v671
    %704 = vst [vmem:[#allocation7 + $0x70] sm:$0xff] %v672
    %705 = vst [vmem:[#allocation7 + $0x78] sm:$0xff] %v673
    %706 = vst [vmem:[#allocation7 + $0x80] sm:$0xff] %v674
    %707 = vst [vmem:[#allocation7 + $0x88] sm:$0xff] %v675
    %708 = vst [vmem:[#allocation7 + $0x90] sm:$0xff] %v676
    %709 = vst [vmem:[#allocation7 + $0x98] sm:$0xff] %v677
    %710 = vst [vmem:[#allocation7 + $0xa0] sm:$0xff] %v678
    %711 = vst [vmem:[#allocation7 + $0xa8] sm:$0xff] %v679
    %712 = vst [vmem:[#allocation7 + $0xb0] sm:$0xff] %v680
    %713 = vst [vmem:[#allocation7 + $0xb8] sm:$0xff] %v681
    %714 = vst [vmem:[#allocation7 + $0xc0] sm:$0xff] %v682
    %715 = vst [vmem:[#allocation7 + $0xc8] sm:$0xff] %v683
    %716 = vst [vmem:[#allocation7 + $0xd0] sm:$0xff] %v684
    %717 = vst [vmem:[#allocation7 + $0xd8] sm:$0xff] %v685
    %718 = vst [vmem:[#allocation7 + $0xe0] sm:$0xff] %v686
    %719 = vst [vmem:[#allocation7 + $0xe8] sm:$0xff] %v687
    %720 = vst [vmem:[#allocation7 + $0xf0] sm:$0xff] %v688
    %721 = vst [vmem:[#allocation7 + $0xf8] sm:$0xff] %v689
    // Predicated region
    $region14: #{tpu_custom_call.1} parent=1 // pred_check
      _
    $region15: #{tpu_custom_call.1} parent=1 // pred_check_branch
      %723 = sbr.rel (0) target = $region17
    $region16: #{tpu_custom_call.1} parent=1 // pred_region
      %s725 = ssub.s32 4096, 4096
      %726 = vsyncadd [#allocation6], %s725
      %s727 = sshll.u32 [#allocation7], 4
      %s728 = int_to_ptr.vmem [resolvable:$true] %s727
      %733 = dma.vmem_to_hbm [thread:$0]  %s728, 4096, %s1, [#allocation6], 128, 128, 8
    $region17: #{tpu_custom_call.1} parent=1 // pred_fallthru
      _
    // Predicated region
    $region18: #{tpu_custom_call.1} parent=1 // pred_check
      _
    $region19: #{tpu_custom_call.1} parent=1 // pred_check_branch
      %735 = sbr.rel (0) target = $region21
    $region20: #{tpu_custom_call.1} parent=1 // pred_region
      %736 = dma.done [#allocation6], 4096
    $region21: #{tpu_custom_call.1} parent=1 // pred_fallthru
      _
    %737 = vsyncpa [#allocation5], 1
    %738 = vsyncpa [#allocation6], 1

</llo_original>
